<compile_context>
chip_gen: v7x
topology: tpu7x:2x2x1
jax: 0.10.0
libtpu: 0.0.40
codegen_flags: <defaults>
</compile_context>

<pallas_src>
import functools

import jax
import jax.numpy as jnp
from jax.experimental import pallas as pl
from jax.experimental.pallas import tpu as pltpu


def _pool_proj_kernel(x_ref, pm_ref, w_ref, o_ref, *, inv_kk):
    """Fused AvgPool2d + (identity rms_norm) + Linear for one (batch, token-tile) block.

    x_ref:  (1, Tt*KK, H)  contiguous patch rows feeding this tile's pooled tokens
    pm_ref: (Tt, Tt*KK)    constant 0/1 pooling matrix (bf16), resident in VMEM
    w_ref:  (H, dim)       projection weight (bf16), fully resident in VMEM
    o_ref:  (1, Tt, dim)
    """
    # Native bf16 MXU inputs, f32 accumulation (no multi-pass f32 decomposition).
    x = x_ref[0].astype(pm_ref.dtype)                       # (Tt*KK, H); no-op if bf16
    # AvgPool2d as a matmul: sum the k*k contributing patches per token, then scale.
    pooled = jnp.dot(pm_ref[...], x,
                     preferred_element_type=jnp.float32) * inv_kk   # (Tt, H) f32
    # rms_norm is nn.Identity() in the reference module -> no-op.
    y = jnp.dot(pooled.astype(w_ref.dtype), w_ref[...],
                preferred_element_type=jnp.float32)          # (Tt, dim) f32 accum
    o_ref[0] = y.astype(o_ref.dtype)


def _pooling_matrix(Tt, Pk, k, dtype):
    """0/1 matrix mapping a block of Tt*KK patch rows to its Tt pooled tokens.

    Block rows are ordered (pr, dr, pc, dc); pooled tokens are ordered (pr, pc),
    exactly matching the PyTorch transpose->AvgPool2d->flatten ordering.
    """
    P = Pk * k
    KK = k * k
    tt = jnp.arange(Tt, dtype=jnp.int32)
    ii = jnp.arange(Tt * KK, dtype=jnp.int32)
    same_row = (ii[None, :] // (k * P)) == (tt[:, None] // Pk)
    same_col = ((ii[None, :] % P) // k) == (tt[:, None] % Pk)
    return (same_row & same_col).astype(dtype)


def _choose_token_tile(T, Pk, B, itemsize, kk, H):
    """Token tile Tt: multiple of Pk (contiguity), dtype-aware sublane quantum,
    VMEM-capped x block, and >= 2 total grid steps (v7x megacore)."""
    quantum = max(8, 32 // max(1, itemsize))      # 8 for f32, 16 for bf16, 32 for int8
    cands = [d for d in range(Pk, T + 1, Pk) if T % d == 0]
    pref = ([d for d in cands if d % quantum == 0]
            or [d for d in cands if d % 8 == 0]
            or cands)
    # Keep the (double-buffered) x block modest: Tt*KK*H*itemsize <= ~4 MiB.
    cap = max(min(pref), (4 << 20) // max(1, kk * H * itemsize))
    sized = [d for d in pref if d <= cap] or [min(pref)]
    tt = max(sized)
    # Guarantee at least 2 grid steps so both v7x TensorCores get work.
    while B * (T // tt) < 2:
        smaller = [d for d in sized if d < tt]
        if not smaller:
            break
        tt = max(smaller)
    return tt


@functools.partial(jax.jit, static_argnames=("patches_per_image", "kernel_size"))
def vision_encoder_head(vision_outputs, w_hd, *, patches_per_image, kernel_size):
    """Pallas implementation of VisionEncoder.forward AFTER the SigLIP backbone.

    vision_outputs: (B, S, H) last_hidden_state, S = patches_per_image**2
    w_hd:           (H, dim)  projection weight, pre-transposed at init
                    (== torch nn.Linear weight.T), ideally already bf16
    returns:        (B, T, dim), T = (patches_per_image // kernel_size)**2
    """
    B, S, H = vision_outputs.shape
    P, k = patches_per_image, kernel_size
    assert S == P * P and P % k == 0
    Pk = P // k
    T = Pk * Pk
    KK = k * k
    Hw, dim = w_hd.shape
    assert Hw == H

    # Weight is kept fully VMEM-resident in bf16 (no-op cast if stored bf16 at init).
    w = w_hd.astype(jnp.bfloat16)

    Tt = _choose_token_tile(T, Pk, B, vision_outputs.dtype.itemsize, KK, H)
    pm = _pooling_matrix(Tt, Pk, k, jnp.bfloat16)

    kernel = functools.partial(_pool_proj_kernel, inv_kk=1.0 / KK)
    grid = (B, T // Tt)

    return pl.pallas_call(
        kernel,
        out_shape=jax.ShapeDtypeStruct((B, T, dim), vision_outputs.dtype),
        grid_spec=pltpu.PrefetchScalarGridSpec(
            num_scalar_prefetch=0,
            grid=grid,
            in_specs=[
                # Contiguous Tt*KK patch rows of the ORIGINAL (B, S, H) layout:
                # block t starts at element row t * Tt * KK (no wrapper transpose).
                pl.BlockSpec((1, Tt * KK, H), lambda b, t: (b, t, 0)),
                # Constant index maps -> DMA'd from HBM exactly once, then resident.
                pl.BlockSpec((Tt, Tt * KK), lambda b, t: (0, 0)),
                pl.BlockSpec((H, dim), lambda b, t: (0, 0)),
            ],
            out_specs=pl.BlockSpec((1, Tt, dim), lambda b, t: (b, t, 0)),
        ),
        compiler_params=pltpu.CompilerParams(
            # Fully parallel grid (no reduction axis): v7x can shard across both TCs.
            dimension_semantics=("parallel", "parallel"),
            # Fits the resident bf16 weight + double-buffered blocks on v5e/v6e/v7x.
            vmem_limit_bytes=48 << 20,
        ),
    )(vision_outputs, pm, w)


if __name__ == "__main__":
    key = jax.random.PRNGKey(0)
    k1, k2 = jax.random.split(key)

    # Small geometry with the same structure as google/siglip-base-patch16-512
    # (real model: P=32, H=768, k=2, T=256).  Here: P=8, H=128, k=2, T=16.
    B = 2
    patches_per_image = 8
    kernel_size = 2
    H = 128
    dim = 128
    S = patches_per_image * patches_per_image
    dtype = jnp.float32

    # TODO(synk): the pretrained SiglipVisionModel backbone (self.vision) is not
    # translated; its last_hidden_state is modeled directly as the input below.
    vision_outputs = jax.random.normal(k1, (B, S, H), dtype=dtype)
    w_proj = (jax.random.normal(k2, (dim, H)) * (H ** -0.5)).astype(dtype)

    # "Init-time" weight prep (outside the per-call path, per perf feedback):
    # transpose to (H, dim) and store in bf16 once.
    w_hd = jnp.asarray(w_proj.T, dtype=jnp.bfloat16)

    y = vision_encoder_head(
        vision_outputs, w_hd,
        patches_per_image=patches_per_image, kernel_size=kernel_size)
    jax.block_until_ready(y)

    # Plain-JAX reference for the same head (avg-pool -> identity norm -> linear),
    # computed in f32 from the stored (bf16) weight.
    Pk = patches_per_image // kernel_size
    T = Pk * Pk
    v = vision_outputs.astype(jnp.float32)
    pooled = v.reshape(B, Pk, kernel_size, Pk, kernel_size, H).mean(axis=(2, 4))
    pooled = pooled.reshape(B, T, H)
    ref = jnp.einsum("bth,hd->btd", pooled, w_hd.astype(jnp.float32)).astype(dtype)

    assert y.shape == (B, T, dim)
    # bf16 MXU operands with f32 accumulation -> relaxed tolerance vs f32 reference.
    assert jnp.allclose(y, ref, atol=2e-2, rtol=2e-2), "mismatch vs reference"

    print("KERNEL_OK")
</pallas_src>

<mosaic_0001>
module attributes {stable_mosaic.version = 11 : i64} {
  func.func @_pool_proj_kernel(%arg0: i32, %arg1: i32, %arg2: memref<1x64x128xf32, #tpu.memory_space<vmem>>, %arg3: memref<16x64xbf16, #tpu.memory_space<vmem>>, %arg4: memref<128x128xbf16, #tpu.memory_space<vmem>>, %arg5: memref<1x16x128xf32, #tpu.memory_space<vmem>>) attributes {dimension_semantics = [#tpu.dimension_semantics<parallel>, #tpu.dimension_semantics<parallel>], iteration_bounds = array<i64: 2, 1>, scalar_prefetch = 0 : i64, scratch_operands = 0 : i64, tpu.core_type = #tpu.core_type<tc>, window_params = [{transform_indices = @transform_0, window_bounds = array<i64: 1, 64, 128>}, {pipeline_mode = #tpu.pipeline_mode<synchronous>, transform_indices = @transform_1, window_bounds = array<i64: 16, 64>}, {pipeline_mode = #tpu.pipeline_mode<synchronous>, transform_indices = @transform_2, window_bounds = array<i64: 128, 128>}, {transform_indices = @transform_3, window_bounds = array<i64: 1, 16, 128>}]} {
    %c0 = arith.constant 0 : index
    %c0_0 = arith.constant 0 : index
    %c0_1 = arith.constant 0 : index
    %0 = vector.load %arg2[%c0, %c0_0, %c0_1] : memref<1x64x128xf32, #tpu.memory_space<vmem>>, vector<1x64x128xf32>
    %1 = vector.shape_cast %0 : vector<1x64x128xf32> to vector<64x128xf32>
    %2 = arith.truncf %1 : vector<64x128xf32> to vector<64x128xbf16>
    %c0_2 = arith.constant 0 : index
    %c0_3 = arith.constant 0 : index
    %3 = vector.load %arg3[%c0_2, %c0_3] : memref<16x64xbf16, #tpu.memory_space<vmem>>, vector<16x64xbf16>
    %cst = arith.constant dense<0.000000e+00> : vector<16x128xf32>
    %4 = tpu.matmul %3, %2, %cst {dimension_numbers = #tpu.dot_dimension_numbers<[1], [0], [0], [1], [0, 0, 1, 1], [], []>} : vector<16x64xbf16>, vector<64x128xbf16>, vector<16x128xf32> -> vector<16x128xf32>
    %cst_4 = arith.constant 2.500000e-01 : f32
    %5 = vector.broadcast %cst_4 : f32 to vector<16x128xf32>
    %6 = arith.mulf %4, %5 : vector<16x128xf32>
    %7 = arith.truncf %6 : vector<16x128xf32> to vector<16x128xbf16>
    %c0_5 = arith.constant 0 : index
    %c0_6 = arith.constant 0 : index
    %8 = vector.load %arg4[%c0_5, %c0_6] : memref<128x128xbf16, #tpu.memory_space<vmem>>, vector<128x128xbf16>
    %cst_7 = arith.constant dense<0.000000e+00> : vector<16x128xf32>
    %9 = tpu.matmul %7, %8, %cst_7 {dimension_numbers = #tpu.dot_dimension_numbers<[1], [0], [0], [1], [0, 0, 1, 1], [], []>} : vector<16x128xbf16>, vector<128x128xbf16>, vector<16x128xf32> -> vector<16x128xf32>
    %c0_8 = arith.constant 0 : index
    %c0_9 = arith.constant 0 : index
    %c0_10 = arith.constant 0 : index
    %10 = vector.load %arg5[%c0_8, %c0_9, %c0_10] : memref<1x16x128xf32, #tpu.memory_space<vmem>>, vector<1x16x128xf32>
    %11 = vector.shape_cast %10 : vector<1x16x128xf32> to vector<16x128xf32>
    %12 = vector.shape_cast %9 : vector<16x128xf32> to vector<1x16x128xf32>
    tpu.vector_store %arg5[%c0_8, %c0_9, %c0_10], %12 {strides = array<i32>} : memref<1x16x128xf32, #tpu.memory_space<vmem>>, vector<1x16x128xf32>,
    return
  }
  func.func @transform_0(%arg0: i32, %arg1: i32) -> (i32, i32, i32) {
    %c0_i32 = arith.constant 0 : i32
    %c0_i32_0 = arith.constant 0 : i32
    return %arg0, %arg1, %c0_i32 : i32, i32, i32
  }
  func.func @transform_1(%arg0: i32, %arg1: i32) -> (i32, i32) {
    %c0_i32 = arith.constant 0 : i32
    %c0_i32_0 = arith.constant 0 : i32
    %c0_i32_1 = arith.constant 0 : i32
    return %c0_i32, %c0_i32_0 : i32, i32
  }
  func.func @transform_2(%arg0: i32, %arg1: i32) -> (i32, i32) {
    %c0_i32 = arith.constant 0 : i32
    %c0_i32_0 = arith.constant 0 : i32
    %c0_i32_1 = arith.constant 0 : i32
    return %c0_i32, %c0_i32_0 : i32, i32
  }
  func.func @transform_3(%arg0: i32, %arg1: i32) -> (i32, i32, i32) {
    %c0_i32 = arith.constant 0 : i32
    %c0_i32_0 = arith.constant 0 : i32
    return %arg0, %arg1, %c0_i32 : i32, i32, i32
  }
}

</mosaic_0001>

<llo_original>
// kernel: vision_encoder_head.1
$region0: #{vision_encoder_head.1}
  #allocation0 [shape = 'u32[]', space=smem, size = 0x4, offset = 0x4, fixed_abs, tag = 'smem constant byte address 0x4 - core index']
  #allocation1 [shape = 'u32[144,128]{1,0:T(1,128)}', space=vmem, size = 0x12000, scoped, tag = 'internal scratch']
  %s0 = inlined_call_operand.hbm [shape: f32[2,64,128], index: 0, kind: input, shape index: {}]
  %s1 = inlined_call_operand.vmem [shape: bf16[16,64], index: 1, kind: input, shape index: {}]
  %s2 = inlined_call_operand.hbm [shape: bf16[128,128], index: 2, kind: input, shape index: {}]
  %s3 = inlined_call_operand.hbm [shape: f32[2,16,128], index: 3, kind: output, shape index: {}]
  %s4 = sld [smem:[#allocation0]]
  $region53: #{vision_encoder_head.1} parent=0
    _
  %s6 = ssub.s32 1, %s4
  %s7 = scalar_select 0, %s6, %s4
  $region1: #{vision_encoder_head.1} parent=0
    #allocation2 [shape = 'u8[65536]{0}', space=vmem, size = 0x10000, scoped, tag = 'input window, operand 0']
    #allocation3 [shape = 's32[2]{0}', space=sflag, size = 0x8, scoped, tag = 'scoped memory for vision_encoder_head.1']
    #allocation4 [shape = 's32[2]{0}', space=sflag, size = 0x8, scoped, tag = 'scoped memory for vision_encoder_head.1']
    #allocation5 [shape = 'u8[32768]{0}', space=vmem, size = 0x8000, scoped, tag = 'input window, operand 2, single buffered']
    #allocation6 [shape = 's32[1]{0}', space=sflag, size = 0x4, scoped, tag = 'scoped memory for vision_encoder_head.1']
    #allocation7 [shape = 'u8[16384]{0}', space=vmem, size = 0x4000, scoped, tag = 'output window, operand 0']
    %8 = vsyncpa [#allocation3], 0
    %s9 = scalar_lea.sflag [#allocation3], 1
    %10 = vsyncpa %s9, 0
    %11 = vsyncpa [#allocation6], 0
    %12 = vsyncpa [#allocation4], 0
    %s13 = scalar_lea.sflag [#allocation4], 1
    %14 = vsyncpa %s13, 0
    loop: start=0, step=1, limit=4
    $region2: #{vision_encoder_head.1} parent=1 // loop_pre_header
      _
    $region3: #{vision_encoder_head.1} parent=1 // loop_header
      %s16 = sphi 0, %s20
      %p17 = scmp.ge.s32.totalorder %s16, 4
      %s23 = sphi 0, %s35
      %s24 = sphi 0, %s31
      %s25 = sphi 0, %s23
      %s26 = sphi 0, %s24
      %s27 = sphi 0, %s25
      %s28 = sphi 0, %s26
      %s40 = sphi 0, %s42
      %s43 = sphi 0, %s40
      %s44 = sphi 0, %s43
      %s60 = sphi 0, %s44
      %s64 = sphi 0, %s64
      %s66 = sphi 0, %s64
      %s67 = sphi 0, %s66
      %s81 = sphi 0, %s67
      %s85 = sphi 0, %s85
      %s87 = sphi 0, %s85
      %s88 = sphi 0, %s87
      %s102 = sphi 0, %s88
      %s110 = sphi 0, %s112
      %s113 = sphi 0, %s110
      %s114 = sphi 0, %s113
      %s130 = sphi 0, %s114
    $region4: #{vision_encoder_head.1} parent=1 // loop_header_branch
      %19 = sbr.rel (%p17) target = $region8
    $region5: #{vision_encoder_head.1} parent=1 // loop_body
      %s21 = ssub.s32 %s16, 1
      %s22 = ssub.s32 %s16, 2
      %s29 = sadd.s32 1, %s24
      %p30 = scmp.ge.s32.totalorder %s29, 1
      %s31 = scalar_select %p30, 0, %s29
      %s32 = sadd.s32 1, %s23
      %s33 = scalar_select %p30, %s32, %s23
      %p34 = scmp.ge.s32.totalorder %s33, 2
      %s35 = scalar_select %p34, 0, %s33
      %s36 = ssub.s32 %s23, %s35
      %s37 = ssub.s32 %s24, %s31
      %s38 = sor.u32 %s36, %s37
      %p39 = scmp.eq.s32.totalorder %s38, 0
      %s41 = sadd.s32 %s40, 1
      %s42 = scalar_select %p39, %s40, %s41
      %p45 = pneg %p39
      %p46 = scmp.eq.s32.totalorder %s16, 1
      %p47 = por %p45, %p46
      %p48 = scmp.ne.s32.totalorder %s40, %s43
      %p49 = scmp.eq.s32.totalorder %s16, 0
      %p50 = por %p48, %p49
      %p51 = scmp.ne.s32.totalorder %s40, %s43
      %p52 = scmp.eq.s32.totalorder %s21, 1
      %p53 = por %p51, %p52
      %p54 = scmp.ne.s32.totalorder %s43, %s44
      %p55 = scmp.eq.s32.totalorder %s21, 0
      %p56 = por %p54, %p55
      %p57 = scmp.ne.s32.totalorder %s43, %s44
      %p58 = scmp.eq.s32.totalorder %s22, 1
      %p59 = por %p57, %p58
      %p61 = scmp.ne.s32.totalorder %s44, %s60
      %p62 = scmp.eq.s32.totalorder %s22, 0
      %p63 = por %p61, %p62
      %s65 = sadd.s32 %s64, 1
      %p68 = scmp.eq.s32.totalorder %s16, 1
      %p69 = scmp.ne.s32.totalorder %s64, %s66
      %p70 = scmp.eq.s32.totalorder %s16, 0
      %p71 = por %p69, %p70
      %p72 = scmp.ne.s32.totalorder %s64, %s66
      %p73 = scmp.eq.s32.totalorder %s21, 1
      %p74 = por %p72, %p73
      %p75 = scmp.ne.s32.totalorder %s66, %s67
      %p76 = scmp.eq.s32.totalorder %s21, 0
      %p77 = por %p75, %p76
      %p78 = scmp.ne.s32.totalorder %s66, %s67
      %p79 = scmp.eq.s32.totalorder %s22, 1
      %p80 = por %p78, %p79
      %p82 = scmp.ne.s32.totalorder %s67, %s81
      %p83 = scmp.eq.s32.totalorder %s22, 0
      %p84 = por %p82, %p83
      %s86 = sadd.s32 %s85, 1
      %p89 = scmp.eq.s32.totalorder %s16, 1
      %p90 = scmp.ne.s32.totalorder %s85, %s87
      %p91 = scmp.eq.s32.totalorder %s16, 0
      %p92 = por %p90, %p91
      %p93 = scmp.ne.s32.totalorder %s85, %s87
      %p94 = scmp.eq.s32.totalorder %s21, 1
      %p95 = por %p93, %p94
      %p96 = scmp.ne.s32.totalorder %s87, %s88
      %p97 = scmp.eq.s32.totalorder %s21, 0
      %p98 = por %p96, %p97
      %p99 = scmp.ne.s32.totalorder %s87, %s88
      %p100 = scmp.eq.s32.totalorder %s22, 1
      %p101 = por %p99, %p100
      %p103 = scmp.ne.s32.totalorder %s88, %s102
      %p104 = scmp.eq.s32.totalorder %s22, 0
      %p105 = por %p103, %p104
      %s106 = ssub.s32 %s23, %s35
      %s107 = ssub.s32 %s24, %s31
      %s108 = sor.u32 %s106, %s107
      %p109 = scmp.eq.s32.totalorder %s108, 0
      %s111 = sadd.s32 %s110, 1
      %s112 = scalar_select %p109, %s110, %s111
      %p115 = pneg %p109
      %p116 = scmp.eq.s32.totalorder %s16, 1
      %p117 = por %p115, %p116
      %p118 = scmp.ne.s32.totalorder %s110, %s113
      %p119 = scmp.eq.s32.totalorder %s16, 0
      %p120 = por %p118, %p119
      %p121 = scmp.ne.s32.totalorder %s110, %s113
      %p122 = scmp.eq.s32.totalorder %s21, 1
      %p123 = por %p121, %p122
      %p124 = scmp.ne.s32.totalorder %s113, %s114
      %p125 = scmp.eq.s32.totalorder %s21, 0
      %p126 = por %p124, %p125
      %p127 = scmp.ne.s32.totalorder %s113, %s114
      %p128 = scmp.eq.s32.totalorder %s22, 1
      %p129 = por %p127, %p128
      %p131 = scmp.ne.s32.totalorder %s114, %s130
      %p132 = scmp.eq.s32.totalorder %s22, 0
      %p133 = por %p131, %p132
      %p134 = scmp.le.s32.totalorder 1, %s16
      %p135 = scmp.lt.s32.totalorder %s16, 3
      %p136 = pnand %p134, %p135
      %p137 = pneg %p136
      // Predicated region
      $region9: #{vision_encoder_head.1} parent=5 // pred_check
        _
      $region10: #{vision_encoder_head.1} parent=5 // pred_check_branch
        %139 = sbr.rel (%p136) target = $region12
      $region11: #{vision_encoder_head.1} parent=5 // pred_region
        %s140 = ssub.s32 %s16, 1
        // Predicated region
        $region13: #{vision_encoder_head.1} parent=11 // pred_check
          %p141 = pneg %p77
        $region14: #{vision_encoder_head.1} parent=11 // pred_check_branch
          %143 = sbr.rel (%p141) target = $region16
        $region15: #{vision_encoder_head.1} parent=11 // pred_region
          _
        $region16: #{vision_encoder_head.1} parent=11 // pred_fallthru
          _
        // Predicated region
        $region17: #{vision_encoder_head.1} parent=11 // pred_check
          %p144 = pneg %p98
        $region18: #{vision_encoder_head.1} parent=11 // pred_check_branch
          %146 = sbr.rel (%p144) target = $region20
        $region19: #{vision_encoder_head.1} parent=11 // pred_region
          %s148 = ssub.s32 1024, 1024
          %149 = vsyncadd [#allocation6], %s148
          %s150 = sshll.u32 [#allocation5], 4
          %s151 = int_to_ptr.vmem [resolvable:$true] %s150
          %156 = dma.hbm_to_vmem [thread:$0]  %s2, 1024, %s151, [#allocation6], 64, 64, 4
        $region20: #{vision_encoder_head.1} parent=11 // pred_fallthru
          _
      $region12: #{vision_encoder_head.1} parent=5 // pred_fallthru
        _
      %p157 = scmp.lt.s32.totalorder %s16, 2
      // Predicated region
      $region21: #{vision_encoder_head.1} parent=5 // pred_check
        %p158 = pneg %p157
      $region22: #{vision_encoder_head.1} parent=5 // pred_check_branch
        %160 = sbr.rel (%p158) target = $region24
      $region23: #{vision_encoder_head.1} parent=5 // pred_region
        // Predicated region
        $region25: #{vision_encoder_head.1} parent=23 // pred_check
          %p161 = pneg %p50
        $region26: #{vision_encoder_head.1} parent=23 // pred_check_branch
          %163 = sbr.rel (%p161) target = $region28
        $region27: #{vision_encoder_head.1} parent=23 // pred_region
          %s164 = sand.u32 %s40, 1
          %s165 = scalar_lea.sflag [#allocation3], %s164
          %s166 = sand.u32 %s40, 1
          %s167 = smul.addr %s166, 64
          %s168 = scalar_lea.vmem [#allocation2], %s167
          %s169 = smul.u32 8, %s24
          %s171 = ssub.s32 1024, 1024
          %172 = vsyncadd %s165, %s171
          %s173 = smul.addr %s23, 8
          %s174 = sadd.s32 %s169, %s173
          %s175 = smul.addr %s174, 128
          %s176 = scalar_lea.hbm %s0, %s175
          %s177 = sshll.u32 %s168, 4
          %s178 = int_to_ptr.vmem [resolvable:$true] %s177
          %183 = dma.hbm_to_vmem [thread:$0]  %s176, 1024, %s178, %s165, 128, 128, 8
        $region28: #{vision_encoder_head.1} parent=23 // pred_fallthru
          _
      $region24: #{vision_encoder_head.1} parent=5 // pred_fallthru
        _
      %p184 = scmp.le.s32.totalorder 1, %s16
      %p185 = scmp.lt.s32.totalorder %s16, 3
      %p186 = pnand %p184, %p185
      %p187 = pneg %p186
      // Predicated region
      $region29: #{vision_encoder_head.1} parent=5 // pred_check
        _
      $region30: #{vision_encoder_head.1} parent=5 // pred_check_branch
        %189 = sbr.rel (%p186) target = $region32
      $region31: #{vision_encoder_head.1} parent=5 // pred_region
        %s190 = ssub.s32 %s16, 1
        %s191 = sand.u32 %s43, 1
        %s192 = scalar_lea.sflag [#allocation3], %s191
        %s193 = sand.u32 %s43, 1
        %s194 = smul.addr %s193, 64
        %s195 = scalar_lea.vmem [#allocation2], %s194
        // Predicated region
        $region33: #{vision_encoder_head.1} parent=31 // pred_check
          %p196 = pneg %p56
        $region34: #{vision_encoder_head.1} parent=31 // pred_check_branch
          %198 = sbr.rel (%p196) target = $region36
        $region35: #{vision_encoder_head.1} parent=31 // pred_region
          %199 = dma.done %s192, 1024
        $region36: #{vision_encoder_head.1} parent=31 // pred_fallthru
          _
        // Predicated region
        $region37: #{vision_encoder_head.1} parent=31 // pred_check
          %p200 = pneg %p98
        $region38: #{vision_encoder_head.1} parent=31 // pred_check_branch
          %202 = sbr.rel (%p200) target = $region40
        $region39: #{vision_encoder_head.1} parent=31 // pred_region
          %203 = dma.done [#allocation6], 1024
        $region40: #{vision_encoder_head.1} parent=31 // pred_fallthru
          _
        %s204 = sand.u32 %s43, 1
        %s205 = scalar_lea.sflag [#allocation3], %s204
        %s206 = sand.u32 %s43, 1
        %s207 = smul.addr %s206, 64
        %s208 = scalar_lea.vmem [#allocation2], %s207
        %p209 = pneg %p56
        %p210 = pneg %p53
        %p211 = pneg %p77
        %p212 = pneg %p74
        %p213 = pneg %p98
        %p214 = pneg %p95
        %p215 = pneg %p126
        %p216 = pneg %p123
        %s217 = sand.u32 %s113, 1
        %s218 = scalar_lea.sflag [#allocation4], %s217
        %s219 = sand.u32 %s113, 1
        %s220 = smul.addr %s219, 16
        %s221 = scalar_lea.vmem [#allocation7], %s220
        %s222 = smul.u32 8, %s26
        %s223 = smul.u32 2, %s26
        %v225 = vld [vmem:[%s195] sm:$0xff]
        %v226 = vld [vmem:[%s195 + $0x8] sm:$0xff]
        %v227 = vld [vmem:[%s195 + $0x10] sm:$0xff]
        %v228 = vld [vmem:[%s195 + $0x18] sm:$0xff]
        %v229 = vld [vmem:[%s195 + $0x20] sm:$0xff]
        %v230 = vld [vmem:[%s195 + $0x28] sm:$0xff]
        %v231 = vld [vmem:[%s195 + $0x30] sm:$0xff]
        %v232 = vld [vmem:[%s195 + $0x38] sm:$0xff]
        %v233 = vpack.c.bf16 %v226, %v225
        %v234 = vpack.c.bf16 %v228, %v227
        %v235 = vpack.c.bf16 %v230, %v229
        %v236 = vpack.c.bf16 %v232, %v231
        %v237 = vld [vmem:[%s1] sm:$0xf]
        %v238 = vld [vmem:[%s1 + $0x4] sm:$0xf]
        %v241 = vunpack.c.l.b16 %v237
        %v242 = vunpack.c.l.b16 %v238
        %v243 = vpack.c.b16 %v242, %v241
        %vm244 = vcmask 523264
        %v246 = vsel %vm244, %v243, 0
        %248 = vmatprep.subr.bf16.mxu0 0
        %249 = vmatpush1.bf16.msra.mxu0 %v233
        %250 = vmatprep.subr.bf16.mxu0 0
        %251 = vmatpush1.bf16.msra.mxu0 %v234
        %252 = vmatprep.subr.bf16.mxu0 0
        %253 = vmatpush1.bf16.msra.mxu0 %v235
        %254 = vmatprep.subr.bf16.mxu0 0
        %255 = vmatpush1.bf16.msra.mxu0 %v236
        %256 = vmatprep.subr.bf16.mxu0 0
        %257 = vmatpush1.bf16.msra.mxu0 0
        %258 = vmatprep.subr.bf16.mxu0 0
        %259 = vmatpush1.bf16.msra.mxu0 0
        %260 = vmatprep.subr.bf16.mxu0 0
        %261 = vmatpush1.bf16.msra.mxu0 0
        %262 = vmatprep.subr.bf16.mxu0 0
        %263 = vmatpush1.bf16.msra.mxu0 0
        %264 = vmatprep.subr.bf16.mxu0 0
        %265 = vmatpush1.bf16.msra.mxu0 0
        %266 = vmatprep.subr.bf16.mxu0 0
        %267 = vmatpush1.bf16.msra.mxu0 0
        %268 = vmatprep.subr.bf16.mxu0 0
        %269 = vmatpush1.bf16.msra.mxu0 0
        %270 = vmatprep.subr.bf16.mxu0 0
        %271 = vmatpush1.bf16.msra.mxu0 0
        %272 = vmatprep.subr.bf16.mxu0 0
        %273 = vmatpush1.bf16.msra.mxu0 0
        %274 = vmatprep.subr.bf16.mxu0 0
        %275 = vmatpush1.bf16.msra.mxu0 0
        %276 = vmatprep.subr.bf16.mxu0 0
        %277 = vmatpush1.bf16.msra.mxu0 0
        %278 = vmatprep.subr.bf16.mxu0 0
        %279 = vmatpush1.bf16.msra.mxu0 0
        %280 = vmatprep.mubr.bf16.mxu0 0
        %281 = vmatmul.mubr.bf16.gmra.mrb[0].mxu0 %v246
        %v282 = vpop.f32.mrb[0].mxu0
        %v283 = vadd.f32 0.0, %v282
        %v284 = vpop.f32.mrb[0].mxu0
        %v285 = vpop.f32.mrb[0].mxu0
        %v286 = vadd.f32 0.0, %v285
        %v287 = vpop.f32.mrb[0].mxu0
        %288 = vdwg.mxu0
        %v289 = vmul.f32 %v283, 0.25
        %v290 = vmul.f32 %v286, 0.25
        %v291 = vpack.c.bf16 %v290, %v289
        %v292 = vld [vmem:[#allocation5] sm:$0xf]
        %v293 = vld [vmem:[#allocation5 + $0x4] sm:$0xf]
        %v294 = vld [vmem:[#allocation5 + $0x8] sm:$0xf]
        %v295 = vld [vmem:[#allocation5 + $0xc] sm:$0xf]
        %v296 = vld [vmem:[#allocation5 + $0x10] sm:$0xf]
        %v297 = vld [vmem:[#allocation5 + $0x14] sm:$0xf]
        %v298 = vld [vmem:[#allocation5 + $0x18] sm:$0xf]
        %v299 = vld [vmem:[#allocation5 + $0x1c] sm:$0xf]
        %v300 = vld [vmem:[#allocation5 + $0x20] sm:$0xf]
        %v301 = vld [vmem:[#allocation5 + $0x24] sm:$0xf]
        %v302 = vld [vmem:[#allocation5 + $0x28] sm:$0xf]
        %v303 = vld [vmem:[#allocation5 + $0x2c] sm:$0xf]
        %v304 = vld [vmem:[#allocation5 + $0x30] sm:$0xf]
        %v305 = vld [vmem:[#allocation5 + $0x34] sm:$0xf]
        %v306 = vld [vmem:[#allocation5 + $0x38] sm:$0xf]
        %v307 = vld [vmem:[#allocation5 + $0x3c] sm:$0xf]
        %v324 = vunpack.c.l.b16 %v292
        %v325 = vunpack.c.l.b16 %v293
        %v326 = vunpack.c.l.b16 %v294
        %v327 = vunpack.c.l.b16 %v295
        %v328 = vunpack.c.l.b16 %v296
        %v329 = vunpack.c.l.b16 %v297
        %v330 = vunpack.c.l.b16 %v298
        %v331 = vunpack.c.l.b16 %v299
        %v332 = vunpack.c.l.b16 %v300
        %v333 = vunpack.c.l.b16 %v301
        %v334 = vunpack.c.l.b16 %v302
        %v335 = vunpack.c.l.b16 %v303
        %v336 = vunpack.c.l.b16 %v304
        %v337 = vunpack.c.l.b16 %v305
        %v338 = vunpack.c.l.b16 %v306
        %v339 = vunpack.c.l.b16 %v307
        %v340 = vpack.c.b16 %v325, %v324
        %v341 = vpack.c.b16 %v327, %v326
        %v342 = vpack.c.b16 %v329, %v328
        %v343 = vpack.c.b16 %v331, %v330
        %v344 = vpack.c.b16 %v333, %v332
        %v345 = vpack.c.b16 %v335, %v334
        %v346 = vpack.c.b16 %v337, %v336
        %v347 = vpack.c.b16 %v339, %v338
        %356 = vmatprep.subr.bf16.mxu0 0
        %357 = vmatpush1.bf16.msra.mxu0 %v340
        %358 = vmatprep.subr.bf16.mxu0 0
        %359 = vmatpush1.bf16.msra.mxu0 %v341
        %360 = vmatprep.subr.bf16.mxu0 0
        %361 = vmatpush1.bf16.msra.mxu0 %v342
        %362 = vmatprep.subr.bf16.mxu0 0
        %363 = vmatpush1.bf16.msra.mxu0 %v343
        %364 = vmatprep.subr.bf16.mxu0 0
        %365 = vmatpush1.bf16.msra.mxu0 %v344
        %366 = vmatprep.subr.bf16.mxu0 0
        %367 = vmatpush1.bf16.msra.mxu0 %v345
        %368 = vmatprep.subr.bf16.mxu0 0
        %369 = vmatpush1.bf16.msra.mxu0 %v346
        %370 = vmatprep.subr.bf16.mxu0 0
        %371 = vmatpush1.bf16.msra.mxu0 %v347
        %372 = vmatprep.subr.bf16.mxu0 0
        %373 = vmatpush1.bf16.msra.mxu0 0
        %374 = vmatprep.subr.bf16.mxu0 0
        %375 = vmatpush1.bf16.msra.mxu0 0
        %376 = vmatprep.subr.bf16.mxu0 0
        %377 = vmatpush1.bf16.msra.mxu0 0
        %378 = vmatprep.subr.bf16.mxu0 0
        %379 = vmatpush1.bf16.msra.mxu0 0
        %380 = vmatprep.subr.bf16.mxu0 0
        %381 = vmatpush1.bf16.msra.mxu0 0
        %382 = vmatprep.subr.bf16.mxu0 0
        %383 = vmatpush1.bf16.msra.mxu0 0
        %384 = vmatprep.subr.bf16.mxu0 0
        %385 = vmatpush1.bf16.msra.mxu0 0
        %386 = vmatprep.subr.bf16.mxu0 0
        %387 = vmatpush1.bf16.msra.mxu0 0
        %388 = vmatprep.mubr.bf16.mxu0 0
        %389 = vmatmul.mubr.bf16.gmra.mrb[0].mxu0 %v291
        %v390 = vpop.f32.mrb[0].mxu0
        %v391 = vadd.f32 0.0, %v390
        %v392 = vpop.f32.mrb[0].mxu0
        %v393 = vpop.f32.mrb[0].mxu0
        %v394 = vadd.f32 0.0, %v393
        %v395 = vpop.f32.mrb[0].mxu0
        %396 = vdwg.mxu0
        %397 = vst [vmem:[%s221] sm:$0xff] %v391
        %398 = vst [vmem:[%s221 + $0x8] sm:$0xff] %v394
        %s399 = sand.u32 %s113, 1
        %s400 = scalar_lea.sflag [#allocation4], %s399
        %s401 = sand.u32 %s113, 1
        %s402 = smul.addr %s401, 16
        %s403 = scalar_lea.vmem [#allocation7], %s402
        // Predicated region
        $region41: #{vision_encoder_head.1} parent=31 // pred_check
          %p404 = pneg %p123
        $region42: #{vision_encoder_head.1} parent=31 // pred_check_branch
          %406 = sbr.rel (%p404) target = $region44
        $region43: #{vision_encoder_head.1} parent=31 // pred_region
          %s407 = smul.u32 2, %s26
          %s409 = ssub.s32 256, 256
          %410 = vsyncadd %s400, %s409
          %s411 = smul.addr %s25, 2
          %s412 = sadd.s32 %s407, %s411
          %s413 = smul.addr %s412, 128
          %s414 = scalar_lea.hbm %s3, %s413
          %s415 = sshll.u32 %s403, 4
          %s416 = int_to_ptr.vmem [resolvable:$true] %s415
          %421 = dma.vmem_to_hbm [thread:$0]  %s416, 256, %s414, %s400, 128, 128, 8
        $region44: #{vision_encoder_head.1} parent=31 // pred_fallthru
          _
      $region32: #{vision_encoder_head.1} parent=5 // pred_fallthru
        _
      %p422 = scmp.le.s32.totalorder 2, %s16
      // Predicated region
      $region45: #{vision_encoder_head.1} parent=5 // pred_check
        %p423 = pneg %p422
      $region46: #{vision_encoder_head.1} parent=5 // pred_check_branch
        %425 = sbr.rel (%p423) target = $region48
      $region47: #{vision_encoder_head.1} parent=5 // pred_region
        %s426 = ssub.s32 %s16, 2
        // Predicated region
        $region49: #{vision_encoder_head.1} parent=47 // pred_check
          %p427 = pneg %p129
        $region50: #{vision_encoder_head.1} parent=47 // pred_check_branch
          %429 = sbr.rel (%p427) target = $region52
        $region51: #{vision_encoder_head.1} parent=47 // pred_region
          %s430 = sand.u32 %s114, 1
          %s431 = scalar_lea.sflag [#allocation4], %s430
          %s432 = sand.u32 %s114, 1
          %s433 = smul.addr %s432, 16
          %s434 = scalar_lea.vmem [#allocation7], %s433
          %435 = dma.done %s431, 256
        $region52: #{vision_encoder_head.1} parent=47 // pred_fallthru
          _
      $region48: #{vision_encoder_head.1} parent=5 // pred_fallthru
        _
    $region6: #{vision_encoder_head.1} parent=1 // loop_footer
      %s20 = sadd.s32 1, %s16
    $region7: #{vision_encoder_head.1} parent=1 // loop_footer_branch
      %15 = sbr.rel target = $region3
    $region8: #{vision_encoder_head.1} parent=1 // loop_exit
      _
    %436 = vsyncpa [#allocation3], 1
    %s437 = scalar_lea.sflag [#allocation3], 1
    %438 = vsyncpa %s437, 1
    %439 = vsyncpa [#allocation6], 1
    %440 = vsyncpa [#allocation4], 1
    %s441 = scalar_lea.sflag [#allocation4], 1
    %442 = vsyncpa %s441, 1

</llo_original>
